<compile_context>
chip_gen: v5e
topology: v5e:2x2
jax: 0.10.0
libtpu: 0.0.40
codegen_flags: <defaults>
</compile_context>

<pallas_src>
import functools

import numpy as np
import jax
import jax.numpy as jnp
from jax import lax
from jax.experimental import pallas as pl
from jax.experimental.pallas import tpu as pltpu


def _disc_loss_kernel(size_ref, e_ref, m_ref, o_ref,
                      mu_acc, mu2_acc, vnum_acc, vden_acc, *,
                      delta_d, delta_v, alpha, beta, gamma):
    b = pl.program_id(0)
    phase = pl.program_id(1)
    t = pl.program_id(2)
    nt = pl.num_programs(2)

    e = e_ref[0]                                    # (E, TN) f32
    m = m_ref[0].astype(jnp.float32)                # (K, TN) f32 (bf16 in HBM)
    K = m.shape[0]

    n_inst = size_ref[b]                            # scalar i32 from SMEM
    kcol = lax.broadcasted_iota(jnp.int32, (K, 1), 0)
    vk = (kcol < n_inst).astype(jnp.float32)        # (K, 1) cluster validity

    # ---------------- phase 0: centroid accumulation ----------------
    @pl.when(jnp.logical_and(phase == 0, t == 0))
    def _init():
        mu_acc[...] = jnp.zeros_like(mu_acc)
        mu2_acc[...] = jnp.zeros_like(mu2_acc)

    @pl.when(phase == 0)
    def _accum_centroids():
        # sums[k, e] += sum_n m[k, n] * e[e, n]  -> MXU, contraction over big N.
        mu_acc[...] += lax.dot_general(
            m, e, (((1,), (1,)), ((), ())),
            preferred_element_type=jnp.float32)                 # (K, E)
        mu2_acc[...] += jnp.sum(m, axis=1, keepdims=True)       # counts (K, 1)

    @pl.when(jnp.logical_and(phase == 0, t == nt - 1))
    def _finalize_mu():
        counts = mu2_acc[...]                                   # (K, 1)
        # TODO(synk): PyTorch yields NaN for a valid-but-empty cluster; here it is 0.
        mu = (mu_acc[...] / jnp.maximum(counts, 1.0)) * vk      # (K, E)
        mu_acc[...] = mu                                        # reuse scratch as mu
        mu2_acc[...] = jnp.sum(mu * mu, axis=1, keepdims=True)  # reuse as |mu|^2
        vnum_acc[...] = jnp.zeros_like(vnum_acc)
        vden_acc[...] = jnp.zeros_like(vden_acc)

    # ---------------- phase 1: variance accumulation ----------------
    @pl.when(phase == 1)
    def _accum_var():
        mu = mu_acc[...]                                        # (K, E)
        mu2 = mu2_acc[...]                                      # (K, 1)
        e2 = jnp.sum(e * e, axis=0, keepdims=True)              # (1, TN)
        cross = jnp.dot(mu, e, preferred_element_type=jnp.float32)  # (K, TN)
        d2 = jnp.maximum(mu2 + e2 - 2.0 * cross, 0.0)
        dist = jnp.sqrt(d2)                                     # (K, TN)
        m_valid = m * vk                                        # fold validity once
        var = jnp.maximum(dist - delta_v, 0.0) ** 2 * m_valid
        vnum_acc[...] += jnp.sum(var, keepdims=True)            # (1, 1)
        vden_acc[...] += jnp.sum(m_valid, keepdims=True)        # (1, 1)

    # ---------------- finalize per-batch loss ----------------
    @pl.when(jnp.logical_and(phase == 1, t == nt - 1))
    def _finalize():
        mu = mu_acc[...]                                        # (K, E)
        mu2 = mu2_acc[...]                                      # (K, 1)
        n11 = jnp.full((1, 1), n_inst.astype(jnp.float32))      # (1, 1)

        # variance term
        L_v = vnum_acc[...] * pl.reciprocal(
            jnp.maximum(vden_acc[...], 1e-12), approx=True)     # (1, 1)

        # distance term: K is tiny -> direct VPU broadcast difference, no MXU.
        diff = mu[:, None, :] - mu[None, :, :]                  # (K, K, E)
        dkk = jnp.sqrt(jnp.sum(diff * diff, axis=2))            # (K, K)
        ii = lax.broadcasted_iota(jnp.int32, (K, K), 0)
        jj = lax.broadcasted_iota(jnp.int32, (K, K), 1)
        pair_valid = ((ii < n_inst) & (jj < n_inst) & (ii != jj)).astype(jnp.float32)
        hinge = jnp.maximum(2.0 * delta_d - dkk, 0.0) ** 2
        hinge_sum = jnp.sum(hinge * pair_valid, keepdims=True)  # (1, 1)
        pair_cnt = jnp.maximum(n11 * (n11 - 1.0), 1.0)
        L_d = jnp.where(n11 > 1.0,
                        hinge_sum * pl.reciprocal(pair_cnt, approx=True),
                        0.0)                                    # (1, 1)

        # regularization term
        norms = jnp.sqrt(jnp.maximum(mu2, 0.0))                 # (K, 1)
        L_r = jnp.sum(norms * vk, keepdims=True) * pl.reciprocal(
            jnp.maximum(n11, 1.0), approx=True)                 # (1, 1)

        loss_b = alpha * L_v + beta * L_d + gamma * L_r         # (1, 1)
        o_ref[...] = jnp.zeros(o_ref.shape, jnp.float32) + loss_b


def discriminative_loss(embedded, masks, size, delta_d, delta_v,
                        alpha=1.0, beta=1.0, gamma=0.001):
    """embedded: [B, N, E], masks: [B, N, K] (binary), size: [B] int."""
    B, N, E = embedded.shape
    K = masks.shape[2]

    # Lane-dense inputs: N last.  Masks are binary -> bf16 is exact (half HBM bytes).
    e_t = jnp.swapaxes(embedded.astype(jnp.float32), 1, 2)      # [B, E, N]
    m_t = jnp.swapaxes(masks, 1, 2).astype(jnp.bfloat16)        # [B, K, N]
    size_i = jnp.reshape(jnp.asarray(size, jnp.int32), (B,))

    # N-tile: largest multiple of 128 dividing N (capped at 512), else whole N.
    if N % 512 == 0:
        TN = 512
    elif N % 256 == 0:
        TN = 256
    elif N % 128 == 0:
        TN = 128
    else:
        TN = N
    NT = N // TN

    kernel = functools.partial(
        _disc_loss_kernel,
        delta_d=float(delta_d), delta_v=float(delta_v),
        alpha=float(alpha), beta=float(beta), gamma=float(gamma))

    out = pl.pallas_call(
        kernel,
        out_shape=jax.ShapeDtypeStruct((B, 8, 128), jnp.float32),
        grid_spec=pltpu.PrefetchScalarGridSpec(
            num_scalar_prefetch=1,                    # `size` -> SMEM
            grid=(B, 2, NT),                          # batch, phase, N-tile
            in_specs=[
                pl.BlockSpec((1, E, TN), lambda b, p, t, sz: (b, 0, t)),   # embedded
                pl.BlockSpec((1, K, TN), lambda b, p, t, sz: (b, 0, t)),   # masks
            ],
            out_specs=pl.BlockSpec((1, 8, 128), lambda b, p, t, sz: (b, 0, 0)),
            scratch_shapes=[
                pltpu.VMEM((K, E), jnp.float32),      # centroid sums -> mu
                pltpu.VMEM((K, 1), jnp.float32),      # counts -> |mu|^2
                pltpu.VMEM((1, 1), jnp.float32),      # variance numerator
                pltpu.VMEM((1, 1), jnp.float32),      # variance denominator
            ]),
        compiler_params=pltpu.CompilerParams(
            dimension_semantics=("parallel", "arbitrary", "arbitrary")),
    )(size_i, e_t, m_t)

    return jnp.mean(out[:, 0, 0])


def reference_loss(embedded, masks, size, delta_d, delta_v, alpha, beta, gamma):
    """NumPy transcription of the PyTorch forward (for validation)."""
    embedded = np.asarray(embedded, np.float32)
    masks = np.asarray(masks, np.float32)
    size = np.asarray(size)
    B, N, E = embedded.shape
    K = masks.shape[2]

    centroids = np.zeros((B, K, E), np.float32)
    for i in range(B):
        n = int(size[i])
        x = embedded[i][:, None, :] * masks[i][:, :, None]     # [N, K, E]
        centroids[i, :n] = x[:, :n].sum(0) / masks[i][:, :n, None].sum(0)

    L_v = 0.0
    for i in range(B):
        n = int(size[i])
        diff = embedded[i][:, None, :] - centroids[i][None, :, :]
        var = np.linalg.norm(diff, axis=2)
        var = np.clip(var - delta_v, 0.0, None) ** 2 * masks[i]
        L_v += var[:, :n].sum() / masks[i][:, :n].sum()
    L_v /= B

    L_d = 0.0
    for i in range(B):
        n = int(size[i])
        if n <= 1:
            continue
        mu = centroids[i, :n]
        d = np.linalg.norm(mu[:, None, :] - mu[None, :, :], axis=2)
        margin = 2.0 * delta_d * (1.0 - np.eye(n, dtype=np.float32))
        L_d += (np.clip(margin - d, 0.0, None) ** 2).sum() / float(n * (n - 1))
    L_d /= B

    L_r = 0.0
    for i in range(B):
        n = int(size[i])
        L_r += np.linalg.norm(centroids[i, :n], axis=1).mean()
    L_r /= B

    return alpha * L_v + beta * L_d + gamma * L_r


if __name__ == "__main__":
    B, N, E, K = 2, 256, 32, 8
    delta_d, delta_v = 1.5, 0.5

    key = jax.random.PRNGKey(0)
    embedded = jax.random.normal(key, (B, N, E), dtype=jnp.float32)
    size = jnp.array([5, 8], dtype=jnp.int32)

    # deterministic one-hot instance masks: point p of batch b -> cluster p % size[b]
    labels = np.stack([np.arange(N) % int(s) for s in np.array(size)])   # [B, N]
    masks = jnp.asarray(np.eye(K, dtype=np.float32)[labels])             # [B, N, K]

    loss = discriminative_loss(embedded, masks, size, delta_d, delta_v,
                               alpha=1.0, beta=1.0, gamma=0.001)
    loss = jax.block_until_ready(loss)

    ref = reference_loss(np.array(embedded), np.array(masks), np.array(size),
                         delta_d, delta_v, 1.0, 1.0, 0.001)
    assert np.allclose(float(loss), float(ref), rtol=5e-3, atol=5e-3), \
        (float(loss), float(ref))
    print("KERNEL_OK")
</pallas_src>

<mosaic_0001>
module attributes {stable_mosaic.version = 11 : i64} {
  func.func @_disc_loss_kernel(%arg0: i32, %arg1: i32, %arg2: i32, %arg3: memref<2xi32, #tpu.memory_space<smem>>, %arg4: memref<1x32x256xf32, #tpu.memory_space<vmem>>, %arg5: memref<1x8x256xbf16, #tpu.memory_space<vmem>>, %arg6: memref<1x8x128xf32, #tpu.memory_space<vmem>>, %arg7: memref<8x32xf32, #tpu.memory_space<vmem>>, %arg8: memref<8x1xf32, #tpu.memory_space<vmem>>, %arg9: memref<1x1xf32, #tpu.memory_space<vmem>>, %arg10: memref<1x1xf32, #tpu.memory_space<vmem>>) attributes {dimension_semantics = [#tpu.dimension_semantics<parallel>, #tpu.dimension_semantics<arbitrary>, #tpu.dimension_semantics<arbitrary>], iteration_bounds = array<i64: 2, 2, 1>, scalar_prefetch = 1 : i64, scratch_operands = 4 : i64, tpu.core_type = #tpu.core_type<tc>, window_params = [{transform_indices = @transform_0, window_bounds = array<i64: 1, 32, 256>}, {transform_indices = @transform_1, window_bounds = array<i64: 1, 8, 256>}, {transform_indices = @transform_2, window_bounds = array<i64: 1, 8, 128>}]} {
    %c0 = arith.constant 0 : index
    %c0_0 = arith.constant 0 : index
    %c0_1 = arith.constant 0 : index
    %0 = vector.load %arg4[%c0, %c0_0, %c0_1] : memref<1x32x256xf32, #tpu.memory_space<vmem>>, vector<1x32x256xf32>
    %1 = vector.shape_cast %0 : vector<1x32x256xf32> to vector<32x256xf32>
    %c0_2 = arith.constant 0 : index
    %c0_3 = arith.constant 0 : index
    %c0_4 = arith.constant 0 : index
    %2 = vector.load %arg5[%c0_2, %c0_3, %c0_4] : memref<1x8x256xbf16, #tpu.memory_space<vmem>>, vector<1x8x256xbf16>
    %3 = vector.shape_cast %2 : vector<1x8x256xbf16> to vector<8x256xbf16>
    %4 = arith.extf %3 : vector<8x256xbf16> to vector<8x256xf32>
    %5 = arith.index_cast %arg0 : i32 to index
    %6 = memref.load %arg3[%5] : memref<2xi32, #tpu.memory_space<smem>>
    %7 = tpu.iota {dimensions = array<i32: 0>} : vector<8x1xi32>
    %8 = vector.broadcast %6 : i32 to vector<8x1xi32>
    %9 = arith.cmpi slt, %7, %8 : vector<8x1xi32>
    %10 = arith.extui %9 : vector<8x1xi1> to vector<8x1xi32>
    %11 = arith.sitofp %10 : vector<8x1xi32> to vector<8x1xf32>
    %c0_i32 = arith.constant 0 : i32
    %12 = arith.cmpi eq, %arg1, %c0_i32 : i32
    %c0_i32_5 = arith.constant 0 : i32
    %13 = arith.cmpi eq, %arg2, %c0_i32_5 : i32
    %14 = arith.andi %12, %13 : i1
    %15 = arith.extui %14 : i1 to i32
    %c0_i32_6 = arith.constant 0 : i32
    %16 = arith.cmpi ne, %15, %c0_i32_6 : i32
    scf.if %16 {
      %cst = arith.constant 0.000000e+00 : f32
      %33 = vector.broadcast %cst : f32 to vector<8x32xf32>
      %c0_16 = arith.constant 0 : index
      %c0_17 = arith.constant 0 : index
      %34 = vector.load %arg7[%c0_16, %c0_17] : memref<8x32xf32, #tpu.memory_space<vmem>>, vector<8x32xf32>
      tpu.vector_store %arg7[%c0_16, %c0_17], %33 {strides = array<i32>} : memref<8x32xf32, #tpu.memory_space<vmem>>, vector<8x32xf32>,
      %cst_18 = arith.constant 0.000000e+00 : f32
      %35 = vector.broadcast %cst_18 : f32 to vector<8x1xf32>
      %c0_19 = arith.constant 0 : index
      %c0_20 = arith.constant 0 : index
      %36 = vector.load %arg8[%c0_19, %c0_20] : memref<8x1xf32, #tpu.memory_space<vmem>>, vector<8x1xf32>
      tpu.vector_store %arg8[%c0_19, %c0_20], %35 {strides = array<i32>} : memref<8x1xf32, #tpu.memory_space<vmem>>, vector<8x1xf32>,
    } else {
    }
    %c0_i32_7 = arith.constant 0 : i32
    %17 = arith.cmpi eq, %arg1, %c0_i32_7 : i32
    %18 = arith.extui %17 : i1 to i32
    %c0_i32_8 = arith.constant 0 : i32
    %19 = arith.cmpi ne, %18, %c0_i32_8 : i32
    scf.if %19 {
      %c0_16 = arith.constant 0 : index
      %c0_17 = arith.constant 0 : index
      %33 = vector.load %arg7[%c0_16, %c0_17] : memref<8x32xf32, #tpu.memory_space<vmem>>, vector<8x32xf32>
      %cst = arith.constant dense<0.000000e+00> : vector<8x32xf32>
      %34 = tpu.matmul %4, %1, %cst {dimension_numbers = #tpu.dot_dimension_numbers<[1], [1], [0], [0], [0, 0, 1, 0], [], []>} : vector<8x256xf32>, vector<32x256xf32>, vector<8x32xf32> -> vector<8x32xf32>
      %35 = arith.addf %33, %34 : vector<8x32xf32>
      %c0_18 = arith.constant 0 : index
      %c0_19 = arith.constant 0 : index
      %36 = vector.load %arg7[%c0_18, %c0_19] : memref<8x32xf32, #tpu.memory_space<vmem>>, vector<8x32xf32>
      tpu.vector_store %arg7[%c0_18, %c0_19], %35 {strides = array<i32>} : memref<8x32xf32, #tpu.memory_space<vmem>>, vector<8x32xf32>,
      %c0_20 = arith.constant 0 : index
      %c0_21 = arith.constant 0 : index
      %37 = vector.load %arg8[%c0_20, %c0_21] : memref<8x1xf32, #tpu.memory_space<vmem>>, vector<8x1xf32>
      %cst_22 = arith.constant dense<0.000000e+00> : vector<8xf32>
      %38 = vector.multi_reduction <add>, %4, %cst_22 [1] : vector<8x256xf32> to vector<8xf32>
      %39 = vector.shape_cast %38 : vector<8xf32> to vector<8x1xf32>
      %40 = arith.addf %37, %39 : vector<8x1xf32>
      %c0_23 = arith.constant 0 : index
      %c0_24 = arith.constant 0 : index
      %41 = vector.load %arg8[%c0_23, %c0_24] : memref<8x1xf32, #tpu.memory_space<vmem>>, vector<8x1xf32>
      tpu.vector_store %arg8[%c0_23, %c0_24], %40 {strides = array<i32>} : memref<8x1xf32, #tpu.memory_space<vmem>>, vector<8x1xf32>,
    } else {
    }
    %c0_i32_9 = arith.constant 0 : i32
    %20 = arith.cmpi eq, %arg1, %c0_i32_9 : i32
    %c0_i32_10 = arith.constant 0 : i32
    %21 = arith.cmpi eq, %arg2, %c0_i32_10 : i32
    %22 = arith.andi %20, %21 : i1
    %23 = arith.extui %22 : i1 to i32
    %c0_i32_11 = arith.constant 0 : i32
    %24 = arith.cmpi ne, %23, %c0_i32_11 : i32
    scf.if %24 {
      %c0_16 = arith.constant 0 : index
      %c0_17 = arith.constant 0 : index
      %33 = vector.load %arg8[%c0_16, %c0_17] : memref<8x1xf32, #tpu.memory_space<vmem>>, vector<8x1xf32>
      %c0_18 = arith.constant 0 : index
      %c0_19 = arith.constant 0 : index
      %34 = vector.load %arg7[%c0_18, %c0_19] : memref<8x32xf32, #tpu.memory_space<vmem>>, vector<8x32xf32>
      %cst = arith.constant 1.000000e+00 : f32
      %35 = vector.broadcast %cst : f32 to vector<8x1xf32>
      %36 = arith.maximumf %33, %35 : vector<8x1xf32>
      %37 = vector.broadcast %36 : vector<8x1xf32> to vector<8x32xf32>
      %38 = arith.divf %34, %37 : vector<8x32xf32>
      %39 = vector.broadcast %11 : vector<8x1xf32> to vector<8x32xf32>
      %40 = arith.mulf %38, %39 : vector<8x32xf32>
      %c0_20 = arith.constant 0 : index
      %c0_21 = arith.constant 0 : index
      %41 = vector.load %arg7[%c0_20, %c0_21] : memref<8x32xf32, #tpu.memory_space<vmem>>, vector<8x32xf32>
      tpu.vector_store %arg7[%c0_20, %c0_21], %40 {strides = array<i32>} : memref<8x32xf32, #tpu.memory_space<vmem>>, vector<8x32xf32>,
      %42 = arith.mulf %40, %40 : vector<8x32xf32>
      %cst_22 = arith.constant dense<0.000000e+00> : vector<8xf32>
      %43 = vector.multi_reduction <add>, %42, %cst_22 [1] : vector<8x32xf32> to vector<8xf32>
      %44 = vector.shape_cast %43 : vector<8xf32> to vector<8x1xf32>
      %c0_23 = arith.constant 0 : index
      %c0_24 = arith.constant 0 : index
      %45 = vector.load %arg8[%c0_23, %c0_24] : memref<8x1xf32, #tpu.memory_space<vmem>>, vector<8x1xf32>
      tpu.vector_store %arg8[%c0_23, %c0_24], %44 {strides = array<i32>} : memref<8x1xf32, #tpu.memory_space<vmem>>, vector<8x1xf32>,
      %cst_25 = arith.constant 0.000000e+00 : f32
      %46 = vector.broadcast %cst_25 : f32 to vector<1x1xf32>
      %c0_26 = arith.constant 0 : index
      %c0_27 = arith.constant 0 : index
      %47 = vector.load %arg9[%c0_26, %c0_27] : memref<1x1xf32, #tpu.memory_space<vmem>>, vector<1x1xf32>
      tpu.vector_store %arg9[%c0_26, %c0_27], %46 {strides = array<i32>} : memref<1x1xf32, #tpu.memory_space<vmem>>, vector<1x1xf32>,
      %cst_28 = arith.constant 0.000000e+00 : f32
      %48 = vector.broadcast %cst_28 : f32 to vector<1x1xf32>
      %c0_29 = arith.constant 0 : index
      %c0_30 = arith.constant 0 : index
      %49 = vector.load %arg10[%c0_29, %c0_30] : memref<1x1xf32, #tpu.memory_space<vmem>>, vector<1x1xf32>
      tpu.vector_store %arg10[%c0_29, %c0_30], %48 {strides = array<i32>} : memref<1x1xf32, #tpu.memory_space<vmem>>, vector<1x1xf32>,
    } else {
    }
    %c1_i32 = arith.constant 1 : i32
    %25 = arith.cmpi eq, %arg1, %c1_i32 : i32
    %26 = arith.extui %25 : i1 to i32
    %c0_i32_12 = arith.constant 0 : i32
    %27 = arith.cmpi ne, %26, %c0_i32_12 : i32
    scf.if %27 {
      %c0_16 = arith.constant 0 : index
      %c0_17 = arith.constant 0 : index
      %33 = vector.load %arg7[%c0_16, %c0_17] : memref<8x32xf32, #tpu.memory_space<vmem>>, vector<8x32xf32>
      %c0_18 = arith.constant 0 : index
      %c0_19 = arith.constant 0 : index
      %34 = vector.load %arg8[%c0_18, %c0_19] : memref<8x1xf32, #tpu.memory_space<vmem>>, vector<8x1xf32>
      %35 = arith.mulf %1, %1 : vector<32x256xf32>
      %cst = arith.constant dense<0.000000e+00> : vector<256xf32>
      %36 = vector.multi_reduction <add>, %35, %cst [0] : vector<32x256xf32> to vector<256xf32>
      %37 = vector.shape_cast %36 : vector<256xf32> to vector<1x256xf32>
      %cst_20 = arith.constant dense<0.000000e+00> : vector<8x256xf32>
      %38 = tpu.matmul %33, %1, %cst_20 {dimension_numbers = #tpu.dot_dimension_numbers<[1], [0], [0], [1], [0, 0, 1, 1], [], []>} : vector<8x32xf32>, vector<32x256xf32>, vector<8x256xf32> -> vector<8x256xf32>
      %39 = vector.broadcast %34 : vector<8x1xf32> to vector<8x256xf32>
      %40 = vector.broadcast %37 : vector<1x256xf32> to vector<8x256xf32>
      %41 = arith.addf %39, %40 : vector<8x256xf32>
      %cst_21 = arith.constant 2.000000e+00 : f32
      %42 = vector.broadcast %cst_21 : f32 to vector<8x256xf32>
      %43 = arith.mulf %42, %38 : vector<8x256xf32>
      %44 = arith.subf %41, %43 : vector<8x256xf32>
      %cst_22 = arith.constant 0.000000e+00 : f32
      %45 = vector.broadcast %cst_22 : f32 to vector<8x256xf32>
      %46 = arith.maximumf %44, %45 : vector<8x256xf32>
      %47 = math.sqrt %46 : vector<8x256xf32>
      %48 = vector.broadcast %11 : vector<8x1xf32> to vector<8x256xf32>
      %49 = arith.mulf %4, %48 : vector<8x256xf32>
      %cst_23 = arith.constant 5.000000e-01 : f32
      %50 = vector.broadcast %cst_23 : f32 to vector<8x256xf32>
      %51 = arith.subf %47, %50 : vector<8x256xf32>
      %cst_24 = arith.constant 0.000000e+00 : f32
      %52 = vector.broadcast %cst_24 : f32 to vector<8x256xf32>
      %53 = arith.maximumf %51, %52 : vector<8x256xf32>
      %54 = arith.mulf %53, %53 : vector<8x256xf32>
      %55 = arith.mulf %54, %49 : vector<8x256xf32>
      %c0_25 = arith.constant 0 : index
      %c0_26 = arith.constant 0 : index
      %56 = vector.load %arg9[%c0_25, %c0_26] : memref<1x1xf32, #tpu.memory_space<vmem>>, vector<1x1xf32>
      %57 = vector.shape_cast %55 : vector<8x256xf32> to vector<1x8x256xf32>
      %cst_27 = arith.constant dense<0.000000e+00> : vector<1xf32>
      %58 = vector.multi_reduction <add>, %57, %cst_27 [1, 2] : vector<1x8x256xf32> to vector<1xf32>
      %59 = vector.shape_cast %58 : vector<1xf32> to vector<1x1x1xf32>
      %60 = vector.extract %59[0, 0, 0] : f32 from vector<1x1x1xf32>
      %61 = vector.broadcast %60 : f32 to vector<1x1xf32>
      %62 = arith.addf %56, %61 : vector<1x1xf32>
      %c0_28 = arith.constant 0 : index
      %c0_29 = arith.constant 0 : index
      %63 = vector.load %arg9[%c0_28, %c0_29] : memref<1x1xf32, #tpu.memory_space<vmem>>, vector<1x1xf32>
      tpu.vector_store %arg9[%c0_28, %c0_29], %62 {strides = array<i32>} : memref<1x1xf32, #tpu.memory_space<vmem>>, vector<1x1xf32>,
      %c0_30 = arith.constant 0 : index
      %c0_31 = arith.constant 0 : index
      %64 = vector.load %arg10[%c0_30, %c0_31] : memref<1x1xf32, #tpu.memory_space<vmem>>, vector<1x1xf32>
      %65 = vector.shape_cast %49 : vector<8x256xf32> to vector<1x8x256xf32>
      %cst_32 = arith.constant dense<0.000000e+00> : vector<1xf32>
      %66 = vector.multi_reduction <add>, %65, %cst_32 [1, 2] : vector<1x8x256xf32> to vector<1xf32>
      %67 = vector.shape_cast %66 : vector<1xf32> to vector<1x1x1xf32>
      %68 = vector.extract %67[0, 0, 0] : f32 from vector<1x1x1xf32>
      %69 = vector.broadcast %68 : f32 to vector<1x1xf32>
      %70 = arith.addf %64, %69 : vector<1x1xf32>
      %c0_33 = arith.constant 0 : index
      %c0_34 = arith.constant 0 : index
      %71 = vector.load %arg10[%c0_33, %c0_34] : memref<1x1xf32, #tpu.memory_space<vmem>>, vector<1x1xf32>
      tpu.vector_store %arg10[%c0_33, %c0_34], %70 {strides = array<i32>} : memref<1x1xf32, #tpu.memory_space<vmem>>, vector<1x1xf32>,
    } else {
    }
    %c1_i32_13 = arith.constant 1 : i32
    %28 = arith.cmpi eq, %arg1, %c1_i32_13 : i32
    %c0_i32_14 = arith.constant 0 : i32
    %29 = arith.cmpi eq, %arg2, %c0_i32_14 : i32
    %30 = arith.andi %28, %29 : i1
    %31 = arith.extui %30 : i1 to i32
    %c0_i32_15 = arith.constant 0 : i32
    %32 = arith.cmpi ne, %31, %c0_i32_15 : i32
    scf.if %32 {
      %c0_16 = arith.constant 0 : index
      %c0_17 = arith.constant 0 : index
      %33 = vector.load %arg7[%c0_16, %c0_17] : memref<8x32xf32, #tpu.memory_space<vmem>>, vector<8x32xf32>
      %c0_18 = arith.constant 0 : index
      %c0_19 = arith.constant 0 : index
      %34 = vector.load %arg8[%c0_18, %c0_19] : memref<8x1xf32, #tpu.memory_space<vmem>>, vector<8x1xf32>
      %35 = arith.sitofp %6 : i32 to f32
      %36 = vector.broadcast %35 : f32 to vector<1x1xf32>
      %c0_20 = arith.constant 0 : index
      %c0_21 = arith.constant 0 : index
      %37 = vector.load %arg9[%c0_20, %c0_21] : memref<1x1xf32, #tpu.memory_space<vmem>>, vector<1x1xf32>
      %c0_22 = arith.constant 0 : index
      %c0_23 = arith.constant 0 : index
      %38 = vector.load %arg10[%c0_22, %c0_23] : memref<1x1xf32, #tpu.memory_space<vmem>>, vector<1x1xf32>
      %cst = arith.constant 9.99999996E-13 : f32
      %39 = vector.broadcast %cst : f32 to vector<1x1xf32>
      %40 = arith.maximumf %38, %39 : vector<1x1xf32>
      %41 = tpu.reciprocal %40 {approx = true} : vector<1x1xf32> -> vector<1x1xf32>
      %42 = arith.mulf %37, %41 : vector<1x1xf32>
      %43 = vector.shape_cast %33 : vector<8x32xf32> to vector<8x1x32xf32>
      %44 = vector.shape_cast %33 : vector<8x32xf32> to vector<1x8x32xf32>
      %45 = vector.broadcast %43 : vector<8x1x32xf32> to vector<8x8x32xf32>
      %46 = vector.broadcast %44 : vector<1x8x32xf32> to vector<8x8x32xf32>
      %47 = arith.subf %45, %46 : vector<8x8x32xf32>
      %48 = arith.mulf %47, %47 : vector<8x8x32xf32>
      %cst_24 = arith.constant dense<0.000000e+00> : vector<8x8xf32>
      %49 = vector.multi_reduction <add>, %48, %cst_24 [2] : vector<8x8x32xf32> to vector<8x8xf32>
      %50 = math.sqrt %49 : vector<8x8xf32>
      %51 = tpu.iota {dimensions = array<i32: 0>} : vector<8x8xi32>
      %52 = tpu.iota {dimensions = array<i32: 1>} : vector<8x8xi32>
      %53 = vector.broadcast %6 : i32 to vector<8x8xi32>
      %54 = arith.cmpi slt, %51, %53 : vector<8x8xi32>
      %55 = vector.broadcast %6 : i32 to vector<8x8xi32>
      %56 = arith.cmpi slt, %52, %55 : vector<8x8xi32>
      %57 = arith.andi %54, %56 : vector<8x8xi1>
      %58 = arith.cmpi ne, %51, %52 : vector<8x8xi32>
      %59 = arith.andi %57, %58 : vector<8x8xi1>
      %60 = arith.extui %59 : vector<8x8xi1> to vector<8x8xi32>
      %61 = arith.sitofp %60 : vector<8x8xi32> to vector<8x8xf32>
      %cst_25 = arith.constant 3.000000e+00 : f32
      %62 = vector.broadcast %cst_25 : f32 to vector<8x8xf32>
      %63 = arith.subf %62, %50 : vector<8x8xf32>
      %cst_26 = arith.constant 0.000000e+00 : f32
      %64 = vector.broadcast %cst_26 : f32 to vector<8x8xf32>
      %65 = arith.maximumf %63, %64 : vector<8x8xf32>
      %66 = arith.mulf %65, %65 : vector<8x8xf32>
      %67 = arith.mulf %66, %61 : vector<8x8xf32>
      %68 = vector.shape_cast %67 : vector<8x8xf32> to vector<1x8x8xf32>
      %cst_27 = arith.constant dense<0.000000e+00> : vector<1xf32>
      %69 = vector.multi_reduction <add>, %68, %cst_27 [1, 2] : vector<1x8x8xf32> to vector<1xf32>
      %70 = vector.shape_cast %69 : vector<1xf32> to vector<1x1x1xf32>
      %71 = vector.extract %70[0, 0, 0] : f32 from vector<1x1x1xf32>
      %72 = vector.broadcast %71 : f32 to vector<1x1xf32>
      %cst_28 = arith.constant 1.000000e+00 : f32
      %73 = vector.broadcast %cst_28 : f32 to vector<1x1xf32>
      %74 = arith.subf %36, %73 : vector<1x1xf32>
      %75 = arith.mulf %36, %74 : vector<1x1xf32>
      %cst_29 = arith.constant 1.000000e+00 : f32
      %76 = vector.broadcast %cst_29 : f32 to vector<1x1xf32>
      %77 = arith.maximumf %75, %76 : vector<1x1xf32>
      %cst_30 = arith.constant 1.000000e+00 : f32
      %78 = vector.broadcast %cst_30 : f32 to vector<1x1xf32>
      %79 = arith.cmpf ogt, %36, %78 : vector<1x1xf32>
      %80 = tpu.reciprocal %77 {approx = true} : vector<1x1xf32> -> vector<1x1xf32>
      %81 = arith.mulf %72, %80 : vector<1x1xf32>
      %cst_31 = arith.constant 0.000000e+00 : f32
      %82 = vector.broadcast %cst_31 : f32 to vector<1x1xf32>
      %83 = arith.select %79, %81, %82 : vector<1x1xi1>, vector<1x1xf32>
      %cst_32 = arith.constant 0.000000e+00 : f32
      %84 = vector.broadcast %cst_32 : f32 to vector<8x1xf32>
      %85 = arith.maximumf %34, %84 : vector<8x1xf32>
      %86 = math.sqrt %85 : vector<8x1xf32>
      %87 = arith.mulf %86, %11 : vector<8x1xf32>
      %88 = vector.shape_cast %87 : vector<8x1xf32> to vector<1x8x1xf32>
      %cst_33 = arith.constant dense<0.000000e+00> : vector<1xf32>
      %89 = vector.multi_reduction <add>, %88, %cst_33 [1, 2] : vector<1x8x1xf32> to vector<1xf32>
      %90 = vector.shape_cast %89 : vector<1xf32> to vector<1x1x1xf32>
      %91 = vector.extract %90[0, 0, 0] : f32 from vector<1x1x1xf32>
      %92 = vector.broadcast %91 : f32 to vector<1x1xf32>
      %cst_34 = arith.constant 1.000000e+00 : f32
      %93 = vector.broadcast %cst_34 : f32 to vector<1x1xf32>
      %94 = arith.maximumf %36, %93 : vector<1x1xf32>
      %95 = tpu.reciprocal %94 {approx = true} : vector<1x1xf32> -> vector<1x1xf32>
      %96 = arith.mulf %92, %95 : vector<1x1xf32>
      %cst_35 = arith.constant 1.000000e+00 : f32
      %97 = vector.broadcast %cst_35 : f32 to vector<1x1xf32>
      %98 = arith.mulf %97, %42 : vector<1x1xf32>
      %cst_36 = arith.constant 1.000000e+00 : f32
      %99 = vector.broadcast %cst_36 : f32 to vector<1x1xf32>
      %100 = arith.mulf %99, %83 : vector<1x1xf32>
      %101 = arith.addf %98, %100 : vector<1x1xf32>
      %cst_37 = arith.constant 1.000000e-03 : f32
      %102 = vector.broadcast %cst_37 : f32 to vector<1x1xf32>
      %103 = arith.mulf %102, %96 : vector<1x1xf32>
      %104 = arith.addf %101, %103 : vector<1x1xf32>
      %cst_38 = arith.constant 0.000000e+00 : f32
      %105 = vector.broadcast %cst_38 : f32 to vector<1x8x128xf32>
      %106 = vector.shape_cast %104 : vector<1x1xf32> to vector<1x1x1xf32>
      %107 = vector.broadcast %106 : vector<1x1x1xf32> to vector<1x8x128xf32>
      %108 = arith.addf %105, %107 : vector<1x8x128xf32>
      %c0_39 = arith.constant 0 : index
      %c0_40 = arith.constant 0 : index
      %c0_41 = arith.constant 0 : index
      %109 = vector.load %arg6[%c0_39, %c0_40, %c0_41] : memref<1x8x128xf32, #tpu.memory_space<vmem>>, vector<1x8x128xf32>
      tpu.vector_store %arg6[%c0_39, %c0_40, %c0_41], %108 {strides = array<i32>} : memref<1x8x128xf32, #tpu.memory_space<vmem>>, vector<1x8x128xf32>,
    } else {
    }
    return
  }
  func.func @transform_0(%arg0: i32, %arg1: i32, %arg2: i32, %arg3: memref<2xi32, #tpu.memory_space<smem>>) -> (i32, i32, i32) {
    %c0_i32 = arith.constant 0 : i32
    %c0_i32_0 = arith.constant 0 : i32
    return %arg0, %c0_i32, %arg2 : i32, i32, i32
  }
  func.func @transform_1(%arg0: i32, %arg1: i32, %arg2: i32, %arg3: memref<2xi32, #tpu.memory_space<smem>>) -> (i32, i32, i32) {
    %c0_i32 = arith.constant 0 : i32
    %c0_i32_0 = arith.constant 0 : i32
    return %arg0, %c0_i32, %arg2 : i32, i32, i32
  }
  func.func @transform_2(%arg0: i32, %arg1: i32, %arg2: i32, %arg3: memref<2xi32, #tpu.memory_space<smem>>) -> (i32, i32, i32) {
    %c0_i32 = arith.constant 0 : i32
    %c0_i32_0 = arith.constant 0 : i32
    %c0_i32_1 = arith.constant 0 : i32
    return %arg0, %c0_i32, %c0_i32_0 : i32, i32, i32
  }
}

</mosaic_0001>

<llo_original>
// kernel: tpu_custom_call.1
$region0: #{tpu_custom_call.1}
  #allocation0 [shape = 'u32[]', space=smem, size = 0x4, offset = 0x4, fixed_abs, tag = 'smem constant byte address 0x4 - core index']
  #allocation1 [shape = 'u32[72,128]{1,0:T(1,128)}', space=vmem, size = 0x9000, scoped, tag = 'internal scratch']
  #allocation2 [shape = 'f32[8,32]{1,0:T(8,128)}', space=vmem, size = 0x1000, scoped, tag = 'scratch operand']
  #allocation3 [shape = 'f32[8,1]{1,0:T(8,128)}', space=vmem, size = 0x1000, scoped, tag = 'scratch operand']
  #allocation4 [shape = 'f32[1,1]{1,0:T(1,128)}', space=vmem, size = 0x200, scoped, tag = 'scratch operand']
  #allocation5 [shape = 'f32[1,1]{1,0:T(1,128)}', space=vmem, size = 0x200, scoped, tag = 'scratch operand']
  #allocation6 [shape = 's32[1]{0}', space=sflag, size = 0x4, scoped, tag = 'scoped memory for tpu_custom_call.1']
  #allocation7 [shape = 'u8[512]{0}', space=smem, size = 0x200, scoped, tag = 'prefetched SMEM operand 0']
  %s0 = inlined_call_operand.hbm [shape: s32[2], index: 0, kind: input, shape index: {}]
  %s1 = inlined_call_operand.hbm [shape: f32[2,32,256], index: 1, kind: input, shape index: {}]
  %s2 = inlined_call_operand.hbm [shape: bf16[2,8,256], index: 2, kind: input, shape index: {}]
  %s3 = inlined_call_operand.hbm [shape: f32[2,8,128], index: 3, kind: output, shape index: {}]
  %s4 = sld [smem:[#allocation0]]
  $region69: #{tpu_custom_call.1} parent=0
    _
  %s6 = ssub.s32 1, %s4
  %s7 = scalar_select 0, %s6, %s4
  %s9 = sshll.u32 %s0, 4
  %s10 = int_to_ptr.hbm [resolvable:$true] %s9
  %12 = dma.hbm_to_smem %s10, 16, [#allocation7], [#allocation6]
  %14 = dma.done [#allocation6], 16
  %15 = sfence
  $region1: #{tpu_custom_call.1} parent=0
    #allocation8 [shape = 'u8[65536]{0}', space=vmem, size = 0x10000, scoped, tag = 'input window, operand 1']
    #allocation9 [shape = 's32[2]{0}', space=sflag, size = 0x8, scoped, tag = 'scoped memory for tpu_custom_call.1']
    #allocation10 [shape = 's32[2]{0}', space=sflag, size = 0x8, scoped, tag = 'scoped memory for tpu_custom_call.1']
    #allocation11 [shape = 'u8[8192]{0}', space=vmem, size = 0x2000, scoped, tag = 'input window, operand 2']
    #allocation12 [shape = 's32[2]{0}', space=sflag, size = 0x8, scoped, tag = 'scoped memory for tpu_custom_call.1']
    #allocation13 [shape = 'u8[8192]{0}', space=vmem, size = 0x2000, scoped, tag = 'output window, operand 0']
    %16 = vsyncpa [#allocation9], 0
    %s17 = scalar_lea.sflag [#allocation9], 1
    %18 = vsyncpa %s17, 0
    %19 = vsyncpa [#allocation12], 0
    %s20 = scalar_lea.sflag [#allocation12], 1
    %21 = vsyncpa %s20, 0
    %22 = vsyncpa [#allocation10], 0
    %s23 = scalar_lea.sflag [#allocation10], 1
    %24 = vsyncpa %s23, 0
    loop: start=0, step=1, limit=6
    $region2: #{tpu_custom_call.1} parent=1 // loop_pre_header
      _
    $region3: #{tpu_custom_call.1} parent=1 // loop_header
      %s26 = sphi 0, %s30
      %p27 = scmp.ge.s32.totalorder %s26, 6
      %s33 = sphi 0, %s52
      %s34 = sphi 0, %s48
      %s35 = sphi 0, %s44
      %s36 = sphi 0, %s33
      %s37 = sphi 0, %s34
      %s38 = sphi 0, %s35
      %s39 = sphi 0, %s36
      %s40 = sphi 0, %s37
      %s41 = sphi 0, %s38
      %s57 = sphi 0, %s59
      %s60 = sphi 0, %s57
      %s61 = sphi 0, %s60
      %s77 = sphi 0, %s61
      %s85 = sphi 0, %s87
      %s88 = sphi 0, %s85
      %s89 = sphi 0, %s88
      %s105 = sphi 0, %s89
      %s111 = sphi 0, %s113
      %s114 = sphi 0, %s111
      %s115 = sphi 0, %s114
      %s131 = sphi 0, %s115
    $region4: #{tpu_custom_call.1} parent=1 // loop_header_branch
      %29 = sbr.rel (%p27) target = $region8
    $region5: #{tpu_custom_call.1} parent=1 // loop_body
      %s31 = ssub.s32 %s26, 1
      %s32 = ssub.s32 %s26, 2
      %s42 = sadd.s32 1, %s35
      %p43 = scmp.ge.s32.totalorder %s42, 1
      %s44 = scalar_select %p43, 0, %s42
      %s45 = sadd.s32 1, %s34
      %s46 = scalar_select %p43, %s45, %s34
      %p47 = scmp.ge.s32.totalorder %s46, 2
      %s48 = scalar_select %p47, 0, %s46
      %s49 = sadd.s32 1, %s33
      %s50 = scalar_select %p47, %s49, %s33
      %p51 = scmp.ge.s32.totalorder %s50, 2
      %s52 = scalar_select %p51, 0, %s50
      %s53 = ssub.s32 %s33, %s52
      %s54 = ssub.s32 %s35, %s44
      %s55 = sor.u32 %s53, %s54
      %p56 = scmp.eq.s32.totalorder %s55, 0
      %s58 = sadd.s32 %s57, 1
      %s59 = scalar_select %p56, %s57, %s58
      %p62 = pneg %p56
      %p63 = scmp.eq.s32.totalorder %s26, 3
      %p64 = por %p62, %p63
      %p65 = scmp.ne.s32.totalorder %s57, %s60
      %p66 = scmp.eq.s32.totalorder %s26, 0
      %p67 = por %p65, %p66
      %p68 = scmp.ne.s32.totalorder %s57, %s60
      %p69 = scmp.eq.s32.totalorder %s31, 3
      %p70 = por %p68, %p69
      %p71 = scmp.ne.s32.totalorder %s60, %s61
      %p72 = scmp.eq.s32.totalorder %s31, 0
      %p73 = por %p71, %p72
      %p74 = scmp.ne.s32.totalorder %s60, %s61
      %p75 = scmp.eq.s32.totalorder %s32, 3
      %p76 = por %p74, %p75
      %p78 = scmp.ne.s32.totalorder %s61, %s77
      %p79 = scmp.eq.s32.totalorder %s32, 0
      %p80 = por %p78, %p79
      %s81 = ssub.s32 %s33, %s52
      %s82 = ssub.s32 %s35, %s44
      %s83 = sor.u32 %s81, %s82
      %p84 = scmp.eq.s32.totalorder %s83, 0
      %s86 = sadd.s32 %s85, 1
      %s87 = scalar_select %p84, %s85, %s86
      %p90 = pneg %p84
      %p91 = scmp.eq.s32.totalorder %s26, 3
      %p92 = por %p90, %p91
      %p93 = scmp.ne.s32.totalorder %s85, %s88
      %p94 = scmp.eq.s32.totalorder %s26, 0
      %p95 = por %p93, %p94
      %p96 = scmp.ne.s32.totalorder %s85, %s88
      %p97 = scmp.eq.s32.totalorder %s31, 3
      %p98 = por %p96, %p97
      %p99 = scmp.ne.s32.totalorder %s88, %s89
      %p100 = scmp.eq.s32.totalorder %s31, 0
      %p101 = por %p99, %p100
      %p102 = scmp.ne.s32.totalorder %s88, %s89
      %p103 = scmp.eq.s32.totalorder %s32, 3
      %p104 = por %p102, %p103
      %p106 = scmp.ne.s32.totalorder %s89, %s105
      %p107 = scmp.eq.s32.totalorder %s32, 0
      %p108 = por %p106, %p107
      %s109 = ssub.s32 %s33, %s52
      %p110 = scmp.eq.s32.totalorder %s109, 0
      %s112 = sadd.s32 %s111, 1
      %s113 = scalar_select %p110, %s111, %s112
      %p116 = pneg %p110
      %p117 = scmp.eq.s32.totalorder %s26, 3
      %p118 = por %p116, %p117
      %p119 = scmp.ne.s32.totalorder %s111, %s114
      %p120 = scmp.eq.s32.totalorder %s26, 0
      %p121 = por %p119, %p120
      %p122 = scmp.ne.s32.totalorder %s111, %s114
      %p123 = scmp.eq.s32.totalorder %s31, 3
      %p124 = por %p122, %p123
      %p125 = scmp.ne.s32.totalorder %s114, %s115
      %p126 = scmp.eq.s32.totalorder %s31, 0
      %p127 = por %p125, %p126
      %p128 = scmp.ne.s32.totalorder %s114, %s115
      %p129 = scmp.eq.s32.totalorder %s32, 3
      %p130 = por %p128, %p129
      %p132 = scmp.ne.s32.totalorder %s115, %s131
      %p133 = scmp.eq.s32.totalorder %s32, 0
      %p134 = por %p132, %p133
      %p135 = scmp.le.s32.totalorder 1, %s26
      %p136 = scmp.lt.s32.totalorder %s26, 5
      %p137 = pnand %p135, %p136
      %p138 = pneg %p137
      // Predicated region
      $region9: #{tpu_custom_call.1} parent=5 // pred_check
        _
      $region10: #{tpu_custom_call.1} parent=5 // pred_check_branch
        %140 = sbr.rel (%p137) target = $region12
      $region11: #{tpu_custom_call.1} parent=5 // pred_region
        %s141 = ssub.s32 %s26, 1
      $region12: #{tpu_custom_call.1} parent=5 // pred_fallthru
        _
      %p142 = scmp.lt.s32.totalorder %s26, 4
      // Predicated region
      $region13: #{tpu_custom_call.1} parent=5 // pred_check
        %p143 = pneg %p142
      $region14: #{tpu_custom_call.1} parent=5 // pred_check_branch
        %145 = sbr.rel (%p143) target = $region16
      $region15: #{tpu_custom_call.1} parent=5 // pred_region
        // Predicated region
        $region17: #{tpu_custom_call.1} parent=15 // pred_check
          %p146 = pneg %p67
        $region18: #{tpu_custom_call.1} parent=15 // pred_check_branch
          %148 = sbr.rel (%p146) target = $region20
        $region19: #{tpu_custom_call.1} parent=15 // pred_region
          %s149 = sand.u32 %s57, 1
          %s150 = scalar_lea.sflag [#allocation9], %s149
          %s151 = sand.u32 %s57, 1
          %s152 = smul.addr %s151, 64
          %s153 = scalar_lea.vmem [#allocation8], %s152
          %s154 = smul.u32 2, %s35
          %156 = vsyncadd %s150, 0
          %s157 = smul.addr %s33, 8
          %s158 = sadd.s32 %s154, %s157
          %s159 = smul.addr %s158, 8
          %s160 = scalar_lea.hbm %s1, %s159
          %s161 = sshll.u32 %s160, 4
          %s162 = int_to_ptr.hbm [resolvable:$true] %s161
          %s163 = sshll.u32 %s153, 4
          %s164 = int_to_ptr.vmem [resolvable:$true] %s163
          %169 = dma.hbm_to_vmem [thread:$0]  %s162, 1024, %s164, %s150, 256, 256, 16
        $region20: #{tpu_custom_call.1} parent=15 // pred_fallthru
          _
        // Predicated region
        $region21: #{tpu_custom_call.1} parent=15 // pred_check
          %p170 = pneg %p95
        $region22: #{tpu_custom_call.1} parent=15 // pred_check_branch
          %172 = sbr.rel (%p170) target = $region24
        $region23: #{tpu_custom_call.1} parent=15 // pred_region
          %s173 = sand.u32 %s85, 1
          %s174 = scalar_lea.sflag [#allocation12], %s173
          %s175 = sand.u32 %s85, 1
          %s176 = smul.addr %s175, 8
          %s177 = scalar_lea.vmem [#allocation11], %s176
          %s178 = smul.u32 2, %s35
          %180 = vsyncadd %s174, 0
          %s181 = smul.addr %s33, 2
          %s182 = sadd.s32 %s178, %s181
          %s183 = smul.addr %s182, 4
          %s184 = scalar_lea.hbm %s2, %s183
          %s186 = sshll.u32 %s184, 4
          %s187 = int_to_ptr.hbm [resolvable:$true] %s186
          %s188 = sshll.u32 %s177, 4
          %s189 = int_to_ptr.vmem [resolvable:$true] %s188
          %191 = dma.hbm_to_vmem [thread:$0]  %s187, 128, %s189, %s174
        $region24: #{tpu_custom_call.1} parent=15 // pred_fallthru
          _
      $region16: #{tpu_custom_call.1} parent=5 // pred_fallthru
        _
      %p192 = scmp.le.s32.totalorder 1, %s26
      %p193 = scmp.lt.s32.totalorder %s26, 5
      %p194 = pnand %p192, %p193
      %p195 = pneg %p194
      // Predicated region
      $region25: #{tpu_custom_call.1} parent=5 // pred_check
        _
      $region26: #{tpu_custom_call.1} parent=5 // pred_check_branch
        %197 = sbr.rel (%p194) target = $region28
      $region27: #{tpu_custom_call.1} parent=5 // pred_region
        %s198 = ssub.s32 %s26, 1
        %s199 = sand.u32 %s60, 1
        %s200 = scalar_lea.sflag [#allocation9], %s199
        %s201 = sand.u32 %s60, 1
        %s202 = smul.addr %s201, 64
        %s203 = scalar_lea.vmem [#allocation8], %s202
        // Predicated region
        $region29: #{tpu_custom_call.1} parent=27 // pred_check
          %p204 = pneg %p73
        $region30: #{tpu_custom_call.1} parent=27 // pred_check_branch
          %206 = sbr.rel (%p204) target = $region32
        $region31: #{tpu_custom_call.1} parent=27 // pred_region
          %208 = dma.done %s200, 1024
        $region32: #{tpu_custom_call.1} parent=27 // pred_fallthru
          _
        %s209 = sand.u32 %s88, 1
        %s210 = scalar_lea.sflag [#allocation12], %s209
        %s211 = sand.u32 %s88, 1
        %s212 = smul.addr %s211, 8
        %s213 = scalar_lea.vmem [#allocation11], %s212
        // Predicated region
        $region33: #{tpu_custom_call.1} parent=27 // pred_check
          %p214 = pneg %p101
        $region34: #{tpu_custom_call.1} parent=27 // pred_check_branch
          %216 = sbr.rel (%p214) target = $region36
        $region35: #{tpu_custom_call.1} parent=27 // pred_region
          %218 = dma.done %s210, 128
        $region36: #{tpu_custom_call.1} parent=27 // pred_fallthru
          _
        %s219 = sand.u32 %s60, 1
        %s220 = scalar_lea.sflag [#allocation9], %s219
        %s221 = sand.u32 %s60, 1
        %s222 = smul.addr %s221, 64
        %s223 = scalar_lea.vmem [#allocation8], %s222
        %p224 = pneg %p73
        %p225 = pneg %p70
        %s226 = sand.u32 %s88, 1
        %s227 = scalar_lea.sflag [#allocation12], %s226
        %s228 = sand.u32 %s88, 1
        %s229 = smul.addr %s228, 8
        %s230 = scalar_lea.vmem [#allocation11], %s229
        %p231 = pneg %p101
        %p232 = pneg %p98
        %p233 = pneg %p127
        %p234 = pneg %p124
        %s235 = sand.u32 %s114, 1
        %s236 = scalar_lea.sflag [#allocation10], %s235
        %s237 = sand.u32 %s114, 1
        %s238 = smul.addr %s237, 8
        %s239 = scalar_lea.vmem [#allocation13], %s238
        %s240 = smul.u32 2, %s38
        %s241 = smul.u32 2, %s38
        %v242 = vld [vmem:[%s203] sm:$0xff]
        %v243 = vld [vmem:[%s203 + $0x8] sm:$0xff]
        %v244 = vld [vmem:[%s203 + $0x10] sm:$0xff]
        %v245 = vld [vmem:[%s203 + $0x18] sm:$0xff]
        %v246 = vld [vmem:[%s203 + $0x20] sm:$0xff]
        %v247 = vld [vmem:[%s203 + $0x28] sm:$0xff]
        %v248 = vld [vmem:[%s203 + $0x30] sm:$0xff]
        %v249 = vld [vmem:[%s203 + $0x38] sm:$0xff]
        %v250 = vld [vmem:[%s213] sm:$0xff]
        %v251 = vunpack.c.l.bf16 %v250
        %v252 = vunpack.c.h.bf16 %v250
        %s253 = sld [smem:[#allocation7 + %s36]]
        %v254 = vlaneseq
        %v255 = vshrl.u32 %v254, 7
        %v256 = vstv %s253
        %vm257 = vcmp.lt.s32.totalorder %v255, %v256
        %v258 = vsel %vm257, 1, 0
        %v259 = vcvt.s32.f32 %v258
        %p260 = scmp.eq.s32.totalorder %s37, 0
        %p261 = scmp.eq.s32.totalorder %s38, 0
        %p262 = pnand %p260, %p261
        %p263 = pneg %p262
        // Predicated region
        $region37: #{tpu_custom_call.1} parent=27 // pred_check
          _
        $region38: #{tpu_custom_call.1} parent=27 // pred_check_branch
          %265 = sbr.rel (%p262) target = $region40
        $region39: #{tpu_custom_call.1} parent=27 // pred_region
          %vm266 = vcmask 261120
          %267 = vst.msk [vmem:[#allocation2] sm:$0xff] %vm266, 0.0
          %vm268 = vcmask 7168
          %269 = vst.msk [vmem:[#allocation3] sm:$0xff] %vm268, 0.0
        $region40: #{tpu_custom_call.1} parent=27 // pred_fallthru
          _
        // Predicated region
        $region41: #{tpu_custom_call.1} parent=27 // pred_check
          %p270 = pneg %p260
        $region42: #{tpu_custom_call.1} parent=27 // pred_check_branch
          %272 = sbr.rel (%p270) target = $region44
        $region43: #{tpu_custom_call.1} parent=27 // pred_region
          %v273 = vld [vmem:[#allocation2] sm:$0xff]
          %274 = vmatpush.xpose.msra.mxu0 0.0
          %275 = vmatpush.xpose.msra.mxu0 0.0
          %276 = vmatpush.xpose.msra.mxu0 0.0
          %277 = vmatpush.xpose.msra.mxu0 0.0
          %278 = vmatpush.xpose.msra.mxu0 0.0
          %279 = vmatpush.xpose.msra.mxu0 0.0
          %280 = vmatpush.xpose.msra.mxu0 0.0
          %281 = vmatpush.xpose.msra.mxu0 0.0
          %282 = vmatpush.xpose.msra.mxu0 0.0
          %283 = vmatpush.xpose.msra.mxu0 0.0
          %284 = vmatpush.xpose.msra.mxu0 0.0
          %285 = vmatpush.xpose.msra.mxu0 0.0
          %286 = vmatpush.xpose.msra.mxu0 %v248
          %287 = vmatpush.xpose.msra.mxu0 %v246
          %288 = vmatpush.xpose.msra.mxu0 %v244
          %289 = vmatpush.xpose.msra.mxu0 %v242
          %290 = vmatmul.f32.gmra.mxu0 %v251
          %v291 = vpop.f32.mrf.mxu0
          %v292 = vadd.f32 0.0, %v291
          %293 = vdwg.mxu0
          %294 = vmatpush.xpose.msra.mxu0 0.0
          %295 = vmatpush.xpose.msra.mxu0 0.0
          %296 = vmatpush.xpose.msra.mxu0 0.0
          %297 = vmatpush.xpose.msra.mxu0 0.0
          %298 = vmatpush.xpose.msra.mxu0 0.0
          %299 = vmatpush.xpose.msra.mxu0 0.0
          %300 = vmatpush.xpose.msra.mxu0 0.0
          %301 = vmatpush.xpose.msra.mxu0 0.0
          %302 = vmatpush.xpose.msra.mxu0 0.0
          %303 = vmatpush.xpose.msra.mxu0 0.0
          %304 = vmatpush.xpose.msra.mxu0 0.0
          %305 = vmatpush.xpose.msra.mxu0 0.0
          %306 = vmatpush.xpose.msra.mxu0 %v249
          %307 = vmatpush.xpose.msra.mxu0 %v247
          %308 = vmatpush.xpose.msra.mxu0 %v245
          %309 = vmatpush.xpose.msra.mxu0 %v243
          %310 = vmatmul.f32.gmra.mxu0 %v252
          %v311 = vpop.f32.mrf.mxu0
          %v312 = vadd.f32 %v292, %v311
          %313 = vdwg.mxu0
          %v314 = vadd.f32 %v273, %v312
          %vm315 = vcmask 261120
          %316 = vst.msk [vmem:[#allocation2] sm:$0xff] %vm315, %v314
          %v317 = vld [vmem:[#allocation3] sm:$0xff]
          %v318 = vadd.f32 %v251, %v252
          %319 = vadd.xlane.f32.xlu0 %v318
          %v320 = vpop.xlane.xlu0 %319
          %v321 = vadd.f32 %v317, %v320
          %vm322 = vcmask 7168
          %323 = vst.msk [vmem:[#allocation3] sm:$0xff] %vm322, %v321
        $region44: #{tpu_custom_call.1} parent=27 // pred_fallthru
          _
        // Predicated region
        $region45: #{tpu_custom_call.1} parent=27 // pred_check
          _
        $region46: #{tpu_custom_call.1} parent=27 // pred_check_branch
          %325 = sbr.rel (%p262) target = $region48
        $region47: #{tpu_custom_call.1} parent=27 // pred_region
          %v326 = vld [vmem:[#allocation3] sm:$0xff]
          %v327 = vld [vmem:[#allocation2] sm:$0xff]
          %v328 = vmax.f32 %v326, 1.0
          %330 = vset.pattern.permute.xlu0 0
          %331 = vperm.xlu0 %330, %v328
          %v332 = vpop.permute.xlu0 %331
          %v334 = vrcp.pop %v332
          %v335 = vmul.f32 %v332, %v334
          %v336 = vsub.f32 1.0, %v335
          %v337 = vmul.f32 %v334, %v336
          %v338 = vadd.f32 %v334, %v337
          %vm339 = vweird.f32 %v332
          %vm340 = vweird.f32 %v334
          %vm341 = vmor %vm339, %vm340
          %v342 = vsel %vm341, %v334, %v338
          %v343 = vand.u32 2147483647, %v332
          %vm344 = vcmp.eq.f32.partialorder %v343, 8.507059e+37
          %v345 = vand.u32 %v332, 2147483648
          %v346 = vor.u32 1.1754944e-38, %v345
          %v347 = vsel %vm344, %v346, %v342
          %v348 = vmul.f32 %v327, %v347
          %v349 = vmul.f32 %v348, %v259
          %vm350 = vcmask 261120
          %351 = vst.msk [vmem:[#allocation2] sm:$0xff] %vm350, %v349
          %v352 = vmul.f32 %v349, %v349
          %v353 = vsel %vm350, %v352, 0.0
          %354 = vadd.xlane.f32.xlu0 %v353
          %v355 = vpop.xlane.xlu0 %354
          %vm356 = vcmask 7168
          %357 = vst.msk [vmem:[#allocation3] sm:$0xff] %vm356, %v355
          %vm358 = vcmask 0
          %359 = vst.msk [vmem:[#allocation4] sm:$0x1] %vm358, 0.0
          %360 = vst.msk [vmem:[#allocation5] sm:$0x1] %vm358, 0.0
        $region48: #{tpu_custom_call.1} parent=27 // pred_fallthru
          _
        %p361 = scmp.eq.s32.totalorder %s37, 1
        // Predicated region
        $region49: #{tpu_custom_call.1} parent=27 // pred_check
          %p362 = pneg %p361
        $region50: #{tpu_custom_call.1} parent=27 // pred_check_branch
          %364 = sbr.rel (%p362) target = $region52
        $region51: #{tpu_custom_call.1} parent=27 // pred_region
          %v365 = vld [vmem:[#allocation2] sm:$0xff]
          %v366 = vld [vmem:[#allocation3] sm:$0xff]
          %v367 = vmul.f32 %v242, %v242
          %v368 = vmul.f32 %v243, %v243
          %v369 = vmul.f32 %v244, %v244
          %v370 = vmul.f32 %v245, %v245
          %v371 = vmul.f32 %v246, %v246
          %v372 = vmul.f32 %v247, %v247
          %v373 = vmul.f32 %v248, %v248
          %v374 = vmul.f32 %v249, %v249
          %v375 = vadd.f32 %v367, %v369
          %v376 = vadd.f32 %v375, %v371
          %v377 = vadd.f32 %v376, %v373
          %v378 = vrot.slane %v377, 4
          %v379 = vadd.f32 %v377, %v378
          %v380 = vrot.slane %v379, 2
          %v381 = vadd.f32 %v379, %v380
          %v382 = vrot.slane %v381, 1
          %v383 = vadd.f32 %v381, %v382
          %v384 = vadd.f32 %v368, %v370
          %v385 = vadd.f32 %v384, %v372
          %v386 = vadd.f32 %v385, %v374
          %v387 = vrot.slane %v386, 4
          %v388 = vadd.f32 %v386, %v387
          %v389 = vrot.slane %v388, 2
          %v390 = vadd.f32 %v388, %v389
          %v391 = vrot.slane %v390, 1
          %v392 = vadd.f32 %v390, %v391
          %vm393 = vcmask 261120
          %v395 = vsel %vm393, %v365, 0
          %397 = vmatpush.msra.mxu0 0.0
          %398 = vmatpush.msra.mxu0 0.0
          %399 = vmatpush.msra.mxu0 0.0
          %400 = vmatpush.msra.mxu0 0.0
          %401 = vmatpush.msra.mxu0 0.0
          %402 = vmatpush.msra.mxu0 0.0
          %403 = vmatpush.msra.mxu0 0.0
          %404 = vmatpush.msra.mxu0 0.0
          %405 = vmatpush.msra.mxu0 0.0
          %406 = vmatpush.msra.mxu0 0.0
          %407 = vmatpush.msra.mxu0 0.0
          %408 = vmatpush.msra.mxu0 0.0
          %409 = vmatpush.msra.mxu0 %v248
          %410 = vmatpush.msra.mxu0 %v246
          %411 = vmatpush.msra.mxu0 %v244
          %412 = vmatpush.msra.mxu0 %v242
          %413 = vmatmul.f32.gmra.mxu0 %v395
          %v414 = vpop.f32.mrf.mxu0
          %v415 = vadd.f32 0.0, %v414
          %416 = vdwg.mxu0
          %417 = vmatpush.msra.mxu0 0.0
          %418 = vmatpush.msra.mxu0 0.0
          %419 = vmatpush.msra.mxu0 0.0
          %420 = vmatpush.msra.mxu0 0.0
          %421 = vmatpush.msra.mxu0 0.0
          %422 = vmatpush.msra.mxu0 0.0
          %423 = vmatpush.msra.mxu0 0.0
          %424 = vmatpush.msra.mxu0 0.0
          %425 = vmatpush.msra.mxu0 0.0
          %426 = vmatpush.msra.mxu0 0.0
          %427 = vmatpush.msra.mxu0 0.0
          %428 = vmatpush.msra.mxu0 0.0
          %429 = vmatpush.msra.mxu0 %v249
          %430 = vmatpush.msra.mxu0 %v247
          %431 = vmatpush.msra.mxu0 %v245
          %432 = vmatpush.msra.mxu0 %v243
          %433 = vmatmul.f32.gmra.mxu0 %v395
          %v434 = vpop.f32.mrf.mxu0
          %v435 = vadd.f32 0.0, %v434
          %436 = vdwg.mxu0
          %438 = vset.pattern.permute.xlu0 0
          %439 = vperm.xlu0 %438, %v366
          %v440 = vpop.permute.xlu0 %439
          %v442 = vadd.f32 %v440, %v383
          %v443 = vadd.f32 %v440, %v392
          %v444 = vmul.f32 %v415, 2.0
          %v445 = vmul.f32 %v435, 2.0
          %v446 = vsub.f32 %v442, %v444
          %v447 = vsub.f32 %v443, %v445
          %v448 = vmax.f32 %v446, 0.0
          %v449 = vmax.f32 %v447, 0.0
          %v450 = vrsqrt.pop %v448
          %v451 = vmul.f32 %v450, %v448
          %v452 = vmul.f32 %v451, %v450
          %v453 = vmul.f32 0.5, %v452
          %v454 = vsub.f32 1.5, %v453
          %v455 = vmul.f32 %v450, %v454
          %v456 = vmul.f32 %v448, %v455
          %vm457 = vcmp.eq.f32.partialorder %v448, inf
          %v458 = vsel %vm457, %v448, %v456
          %vm459 = vcmp.eq.f32.partialorder %v448, 0.0
          %v460 = vand.u32 %v448, 2147483648
          %v461 = vsel %vm459, %v460, %v458
          %v462 = vrsqrt.pop %v449
          %v463 = vmul.f32 %v462, %v449
          %v464 = vmul.f32 %v463, %v462
          %v465 = vmul.f32 0.5, %v464
          %v466 = vsub.f32 1.5, %v465
          %v467 = vmul.f32 %v462, %v466
          %v468 = vmul.f32 %v449, %v467
          %vm469 = vcmp.eq.f32.partialorder %v449, inf
          %v470 = vsel %vm469, %v449, %v468
          %vm471 = vcmp.eq.f32.partialorder %v449, 0.0
          %v472 = vand.u32 %v449, 2147483648
          %v473 = vsel %vm471, %v472, %v470
          %v474 = vmul.f32 %v251, %v259
          %v475 = vmul.f32 %v252, %v259
          %v476 = vsub.f32 %v461, 0.5
          %v477 = vsub.f32 %v473, 0.5
          %v478 = vmax.f32 %v476, 0.0
          %v479 = vmax.f32 %v477, 0.0
          %v480 = vmul.f32 %v478, %v478
          %v481 = vmul.f32 %v479, %v479
          %v482 = vmul.f32 %v480, %v474
          %v483 = vmul.f32 %v481, %v475
          %v484 = vld [vmem:[#allocation4] sm:$0x1]
          %v485 = vadd.f32 %v482, %v483
          %486 = vadd.xlane.f32.xlu0 %v485
          %v487 = vpop.xlane.xlu0 %486
          %v488 = vrot.slane %v487, 4
          %v489 = vadd.f32 %v487, %v488
          %v490 = vrot.slane %v489, 2
          %v491 = vadd.f32 %v489, %v490
          %v492 = vrot.slane %v491, 1
          %v493 = vadd.f32 %v491, %v492
          %s494 = vtos %v493
          %v495 = vstv %s494
          %v496 = vadd.f32 %v484, %v495
          %vm497 = vcmask 0
          %498 = vst.msk [vmem:[#allocation4] sm:$0x1] %vm497, %v496
          %v499 = vld [vmem:[#allocation5] sm:$0x1]
          %v500 = vadd.f32 %v474, %v475
          %501 = vadd.xlane.f32.xlu0 %v500
          %v502 = vpop.xlane.xlu0 %501
          %v503 = vrot.slane %v502, 4
          %v504 = vadd.f32 %v502, %v503
          %v505 = vrot.slane %v504, 2
          %v506 = vadd.f32 %v504, %v505
          %v507 = vrot.slane %v506, 1
          %v508 = vadd.f32 %v506, %v507
          %s509 = vtos %v508
          %v510 = vstv %s509
          %v511 = vadd.f32 %v499, %v510
          %512 = vst.msk [vmem:[#allocation5] sm:$0x1] %vm497, %v511
        $region52: #{tpu_custom_call.1} parent=27 // pred_fallthru
          _
        %p513 = pnand %p361, %p261
        %p514 = pneg %p513
        // Predicated region
        $region53: #{tpu_custom_call.1} parent=27 // pred_check
          _
        $region54: #{tpu_custom_call.1} parent=27 // pred_check_branch
          %516 = sbr.rel (%p513) target = $region56
        $region55: #{tpu_custom_call.1} parent=27 // pred_region
          %v517 = vld [vmem:[#allocation2] sm:$0xff]
          %v518 = vld [vmem:[#allocation3] sm:$0xff]
          %s519 = scvt.s32.f32 %s253
          %v520 = vstv %s519
          %v521 = vld [vmem:[#allocation4] sm:$0x1]
          %v522 = vld [vmem:[#allocation5] sm:$0x1]
          %v523 = vmax.f32 %v522, 1e-12
          %v524 = vrcp.pop %v523
          %v525 = vmul.f32 %v521, %v524
          %v527 = vrot.slane %v517, 1
          %v528 = vrot.slane %v517, 2
          %v529 = vrot.slane %v517, 3
          %v530 = vrot.slane %v517, 4
          %v531 = vrot.slane %v517, 5
          %v532 = vrot.slane %v517, 6
          %v533 = vrot.slane %v517, 7
          %v534 = vperm.slane %v517, 0
          %v535 = vperm.slane %v527, 0
          %v536 = vperm.slane %v528, 0
          %v537 = vperm.slane %v529, 0
          %v538 = vperm.slane %v530, 0
          %v539 = vperm.slane %v531, 0
          %v540 = vperm.slane %v532, 0
          %v541 = vperm.slane %v533, 0
          %v550 = vsub.f32 %v534, %v517
          %v551 = vsub.f32 %v535, %v517
          %v552 = vsub.f32 %v536, %v517
          %v553 = vsub.f32 %v537, %v517
          %v554 = vsub.f32 %v538, %v517
          %v555 = vsub.f32 %v539, %v517
          %v556 = vsub.f32 %v540, %v517
          %v557 = vsub.f32 %v541, %v517
          %v558 = vmul.f32 %v550, %v550
          %v559 = vmul.f32 %v551, %v551
          %v560 = vmul.f32 %v552, %v552
          %v561 = vmul.f32 %v553, %v553
          %v562 = vmul.f32 %v554, %v554
          %v563 = vmul.f32 %v555, %v555
          %v564 = vmul.f32 %v556, %v556
          %v565 = vmul.f32 %v557, %v557
          %vm566 = vcmask 261120
          %v567 = vsel %vm566, %v558, 0.0
          %568 = vadd.xlane.f32.xlu0 %v567
          %v569 = vpop.xlane.xlu0 %568
          %v570 = vsel %vm566, %v559, 0.0
          %571 = vadd.xlane.f32.xlu0 %v570
          %v572 = vpop.xlane.xlu0 %571
          %v573 = vsel %vm566, %v560, 0.0
          %574 = vadd.xlane.f32.xlu0 %v573
          %v575 = vpop.xlane.xlu0 %574
          %v576 = vsel %vm566, %v561, 0.0
          %577 = vadd.xlane.f32.xlu0 %v576
          %v578 = vpop.xlane.xlu0 %577
          %v579 = vsel %vm566, %v562, 0.0
          %580 = vadd.xlane.f32.xlu0 %v579
          %v581 = vpop.xlane.xlu0 %580
          %v582 = vsel %vm566, %v563, 0.0
          %583 = vadd.xlane.f32.xlu0 %v582
          %v584 = vpop.xlane.xlu0 %583
          %v585 = vsel %vm566, %v564, 0.0
          %586 = vadd.xlane.f32.xlu0 %v585
          %v587 = vpop.xlane.xlu0 %586
          %v588 = vsel %vm566, %v565, 0.0
          %589 = vadd.xlane.f32.xlu0 %v588
          %v590 = vpop.xlane.xlu0 %589
          %v591 = vrsqrt.pop %v569
          %v592 = vmul.f32 %v591, %v569
          %v593 = vmul.f32 %v592, %v591
          %v594 = vmul.f32 0.5, %v593
          %v595 = vsub.f32 1.5, %v594
          %v596 = vmul.f32 %v591, %v595
          %v597 = vmul.f32 %v569, %v596
          %vm598 = vcmp.eq.f32.partialorder %v569, inf
          %v599 = vsel %vm598, %v569, %v597
          %vm600 = vcmp.eq.f32.partialorder %v569, 0.0
          %v601 = vand.u32 %v569, 2147483648
          %v602 = vsel %vm600, %v601, %v599
          %v603 = vrsqrt.pop %v572
          %v604 = vmul.f32 %v603, %v572
          %v605 = vmul.f32 %v604, %v603
          %v606 = vmul.f32 0.5, %v605
          %v607 = vsub.f32 1.5, %v606
          %v608 = vmul.f32 %v603, %v607
          %v609 = vmul.f32 %v572, %v608
          %vm610 = vcmp.eq.f32.partialorder %v572, inf
          %v611 = vsel %vm610, %v572, %v609
          %vm612 = vcmp.eq.f32.partialorder %v572, 0.0
          %v613 = vand.u32 %v572, 2147483648
          %v614 = vsel %vm612, %v613, %v611
          %v615 = vrsqrt.pop %v575
          %v616 = vmul.f32 %v615, %v575
          %v617 = vmul.f32 %v616, %v615
          %v618 = vmul.f32 0.5, %v617
          %v619 = vsub.f32 1.5, %v618
          %v620 = vmul.f32 %v615, %v619
          %v621 = vmul.f32 %v575, %v620
          %vm622 = vcmp.eq.f32.partialorder %v575, inf
          %v623 = vsel %vm622, %v575, %v621
          %vm624 = vcmp.eq.f32.partialorder %v575, 0.0
          %v625 = vand.u32 %v575, 2147483648
          %v626 = vsel %vm624, %v625, %v623
          %v627 = vrsqrt.pop %v578
          %v628 = vmul.f32 %v627, %v578
          %v629 = vmul.f32 %v628, %v627
          %v630 = vmul.f32 0.5, %v629
          %v631 = vsub.f32 1.5, %v630
          %v632 = vmul.f32 %v627, %v631
          %v633 = vmul.f32 %v578, %v632
          %vm634 = vcmp.eq.f32.partialorder %v578, inf
          %v635 = vsel %vm634, %v578, %v633
          %vm636 = vcmp.eq.f32.partialorder %v578, 0.0
          %v637 = vand.u32 %v578, 2147483648
          %v638 = vsel %vm636, %v637, %v635
          %v639 = vrsqrt.pop %v581
          %v640 = vmul.f32 %v639, %v581
          %v641 = vmul.f32 %v640, %v639
          %v642 = vmul.f32 0.5, %v641
          %v643 = vsub.f32 1.5, %v642
          %v644 = vmul.f32 %v639, %v643
          %v645 = vmul.f32 %v581, %v644
          %vm646 = vcmp.eq.f32.partialorder %v581, inf
          %v647 = vsel %vm646, %v581, %v645
          %vm648 = vcmp.eq.f32.partialorder %v581, 0.0
          %v649 = vand.u32 %v581, 2147483648
          %v650 = vsel %vm648, %v649, %v647
          %v651 = vrsqrt.pop %v584
          %v652 = vmul.f32 %v651, %v584
          %v653 = vmul.f32 %v652, %v651
          %v654 = vmul.f32 0.5, %v653
          %v655 = vsub.f32 1.5, %v654
          %v656 = vmul.f32 %v651, %v655
          %v657 = vmul.f32 %v584, %v656
          %vm658 = vcmp.eq.f32.partialorder %v584, inf
          %v659 = vsel %vm658, %v584, %v657
          %vm660 = vcmp.eq.f32.partialorder %v584, 0.0
          %v661 = vand.u32 %v584, 2147483648
          %v662 = vsel %vm660, %v661, %v659
          %v663 = vrsqrt.pop %v587
          %v664 = vmul.f32 %v663, %v587
          %v665 = vmul.f32 %v664, %v663
          %v666 = vmul.f32 0.5, %v665
          %v667 = vsub.f32 1.5, %v666
          %v668 = vmul.f32 %v663, %v667
          %v669 = vmul.f32 %v587, %v668
          %vm670 = vcmp.eq.f32.partialorder %v587, inf
          %v671 = vsel %vm670, %v587, %v669
          %vm672 = vcmp.eq.f32.partialorder %v587, 0.0
          %v673 = vand.u32 %v587, 2147483648
          %v674 = vsel %vm672, %v673, %v671
          %v675 = vrsqrt.pop %v590
          %v676 = vmul.f32 %v675, %v590
          %v677 = vmul.f32 %v676, %v675
          %v678 = vmul.f32 0.5, %v677
          %v679 = vsub.f32 1.5, %v678
          %v680 = vmul.f32 %v675, %v679
          %v681 = vmul.f32 %v590, %v680
          %vm682 = vcmp.eq.f32.partialorder %v590, inf
          %v683 = vsel %vm682, %v590, %v681
          %vm684 = vcmp.eq.f32.partialorder %v590, 0.0
          %v685 = vand.u32 %v590, 2147483648
          %v686 = vsel %vm684, %v685, %v683
          %v687 = vlaneseq
          %v688 = vand.u32 %v687, 127
          %vm689 = vcmp.lt.s32.totalorder %v688, %v256
          %vm690 = vmand %vm257, %vm689
          %vm691 = vcmp.ne.s32.totalorder %v255, %v688
          %vm692 = vmand %vm690, %vm691
          %v693 = vsel %vm692, 1, 0
          %v694 = vcvt.s32.f32 %v693
          %v695 = vsub.f32 3.0, %v602
          %v696 = vsub.f32 3.0, %v614
          %v697 = vsub.f32 3.0, %v626
          %v698 = vsub.f32 3.0, %v638
          %v699 = vsub.f32 3.0, %v650
          %v700 = vsub.f32 3.0, %v662
          %v701 = vsub.f32 3.0, %v674
          %v702 = vsub.f32 3.0, %v686
          %v703 = vmax.f32 %v695, 0.0
          %v704 = vmax.f32 %v696, 0.0
          %v705 = vmax.f32 %v697, 0.0
          %v706 = vmax.f32 %v698, 0.0
          %v707 = vmax.f32 %v699, 0.0
          %v708 = vmax.f32 %v700, 0.0
          %v709 = vmax.f32 %v701, 0.0
          %v710 = vmax.f32 %v702, 0.0
          %v711 = vmul.f32 %v703, %v703
          %v712 = vmul.f32 %v704, %v704
          %v713 = vmul.f32 %v705, %v705
          %v714 = vmul.f32 %v706, %v706
          %v715 = vmul.f32 %v707, %v707
          %v716 = vmul.f32 %v708, %v708
          %v717 = vmul.f32 %v709, %v709
          %v718 = vmul.f32 %v710, %v710
          %v720 = vperm.slane %v694, 0
          %v721 = vlaneseq
          %v722 = vshrl.u32 %v721, 7
          %724 = vset.pattern.permute.xlu0 %v722
          %725 = vperm.xlu0 %724, %v720
          %v726 = vpop.permute.xlu0 %725
          %v727 = vperm.slane %v694, 1
          %v728 = vlaneseq
          %v729 = vshrl.u32 %v728, 7
          %731 = vset.pattern.permute.xlu0 %v729
          %732 = vperm.xlu0 %731, %v727
          %v733 = vpop.permute.xlu0 %732
          %v734 = vperm.slane %v694, 2
          %v735 = vlaneseq
          %v736 = vshrl.u32 %v735, 7
          %738 = vset.pattern.permute.xlu0 %v736
          %739 = vperm.xlu0 %738, %v734
          %v740 = vpop.permute.xlu0 %739
          %v741 = vperm.slane %v694, 3
          %v742 = vlaneseq
          %v743 = vshrl.u32 %v742, 7
          %745 = vset.pattern.permute.xlu0 %v743
          %746 = vperm.xlu0 %745, %v741
          %v747 = vpop.permute.xlu0 %746
          %v748 = vperm.slane %v694, 4
          %v749 = vlaneseq
          %v750 = vshrl.u32 %v749, 7
          %752 = vset.pattern.permute.xlu0 %v750
          %753 = vperm.xlu0 %752, %v748
          %v754 = vpop.permute.xlu0 %753
          %v755 = vperm.slane %v694, 5
          %v756 = vlaneseq
          %v757 = vshrl.u32 %v756, 7
          %759 = vset.pattern.permute.xlu0 %v757
          %760 = vperm.xlu0 %759, %v755
          %v761 = vpop.permute.xlu0 %760
          %v762 = vperm.slane %v694, 6
          %v763 = vlaneseq
          %v764 = vshrl.u32 %v763, 7
          %766 = vset.pattern.permute.xlu0 %v764
          %767 = vperm.xlu0 %766, %v762
          %v768 = vpop.permute.xlu0 %767
          %v769 = vperm.slane %v694, 7
          %v770 = vlaneseq
          %v771 = vshrl.u32 %v770, 7
          %773 = vset.pattern.permute.xlu0 %v771
          %774 = vperm.xlu0 %773, %v769
          %v775 = vpop.permute.xlu0 %774
          %v784 = vmul.f32 %v711, %v726
          %v785 = vmul.f32 %v712, %v733
          %v786 = vmul.f32 %v713, %v740
          %v787 = vmul.f32 %v714, %v747
          %v788 = vmul.f32 %v715, %v754
          %v789 = vmul.f32 %v716, %v761
          %v790 = vmul.f32 %v717, %v768
          %v791 = vmul.f32 %v718, %v775
          %800 = vset.pattern.permute.xlu0 0
          %801 = vperm.xlu0 %800, %v784
          %v802 = vpop.permute.xlu0 %801
          %803 = vset.pattern.permute.xlu0 0
          %804 = vperm.xlu0 %803, %v785
          %v805 = vpop.permute.xlu0 %804
          %806 = vset.pattern.permute.xlu0 0
          %807 = vperm.xlu0 %806, %v786
          %v808 = vpop.permute.xlu0 %807
          %809 = vset.pattern.permute.xlu0 0
          %810 = vperm.xlu0 %809, %v787
          %v811 = vpop.permute.xlu0 %810
          %812 = vset.pattern.permute.xlu0 0
          %813 = vperm.xlu0 %812, %v788
          %v814 = vpop.permute.xlu0 %813
          %815 = vset.pattern.permute.xlu0 0
          %816 = vperm.xlu0 %815, %v789
          %v817 = vpop.permute.xlu0 %816
          %818 = vset.pattern.permute.xlu0 0
          %819 = vperm.xlu0 %818, %v790
          %v820 = vpop.permute.xlu0 %819
          %821 = vset.pattern.permute.xlu0 0
          %822 = vperm.xlu0 %821, %v791
          %v823 = vpop.permute.xlu0 %822
          %v824 = vperm.slane %v802, %v688
          %v825 = vperm.slane %v805, %v688
          %v826 = vperm.slane %v808, %v688
          %v827 = vperm.slane %v811, %v688
          %v828 = vperm.slane %v814, %v688
          %v829 = vperm.slane %v817, %v688
          %v830 = vperm.slane %v820, %v688
          %v831 = vperm.slane %v823, %v688
          %vm832 = vcmask 1041409
          %v833 = vsel %vm832, %v825, %v824
          %vm834 = vcmask 1042434
          %v835 = vsel %vm834, %v826, %v833
          %vm836 = vcmask 1043459
          %v837 = vsel %vm836, %v827, %v835
          %vm838 = vcmask 1044484
          %v839 = vsel %vm838, %v828, %v837
          %vm840 = vcmask 1045509
          %v841 = vsel %vm840, %v829, %v839
          %vm842 = vcmask 1046534
          %v843 = vsel %vm842, %v830, %v841
          %vm844 = vcmask 1047559
          %v845 = vsel %vm844, %v831, %v843
          %vm847 = vcmask 64512
          %v848 = vsel %vm847, %v845, 0.0
          %849 = vadd.xlane.f32.xlu0 %v848
          %v850 = vpop.xlane.xlu0 %849
          %v851 = vrot.slane %v850, 4
          %v852 = vadd.f32 %v850, %v851
          %v853 = vrot.slane %v852, 2
          %v854 = vadd.f32 %v852, %v853
          %v855 = vrot.slane %v854, 1
          %v856 = vadd.f32 %v854, %v855
          %s857 = vtos %v856
          %v858 = vstv %s857
          %v859 = vsub.f32 %v520, 1.0
          %v860 = vmul.f32 %v520, %v859
          %v861 = vmax.f32 %v860, 1.0
          %vm862 = vcmp.gt.f32.partialorder %v520, 1.0
          %v863 = vrcp.pop %v861
          %v864 = vmul.f32 %v858, %v863
          %v865 = vsel %vm862, %v864, 0.0
          %v866 = vmax.f32 %v518, 0.0
          %v867 = vrsqrt.pop %v866
          %v868 = vmul.f32 %v867, %v866
          %v869 = vmul.f32 %v868, %v867
          %v870 = vmul.f32 0.5, %v869
          %v871 = vsub.f32 1.5, %v870
          %v872 = vmul.f32 %v867, %v871
          %v873 = vmul.f32 %v866, %v872
          %vm874 = vcmp.eq.f32.partialorder %v866, inf
          %v875 = vsel %vm874, %v866, %v873
          %vm876 = vcmp.eq.f32.partialorder %v866, 0.0
          %v877 = vand.u32 %v866, 2147483648
          %v878 = vsel %vm876, %v877, %v875
          %v879 = vmul.f32 %v878, %v259
          %vm880 = vcmask 7168
          %v881 = vsel %vm880, %v879, 0.0
          %882 = vadd.xlane.f32.xlu0 %v881
          %v883 = vpop.xlane.xlu0 %882
          %v884 = vrot.slane %v883, 4
          %v885 = vadd.f32 %v883, %v884
          %v886 = vrot.slane %v885, 2
          %v887 = vadd.f32 %v885, %v886
          %v888 = vrot.slane %v887, 1
          %v889 = vadd.f32 %v887, %v888
          %s890 = vtos %v889
          %v891 = vstv %s890
          %v892 = vmax.f32 %v520, 1.0
          %v893 = vrcp.pop %v892
          %v894 = vmul.f32 %v891, %v893
          %v895 = vadd.f32 %v525, %v865
          %v896 = vmul.f32 %v894, 0.001
          %v897 = vadd.f32 %v895, %v896
          %v899 = vperm.slane %v897, 0
          %900 = vset.pattern.permute.xlu0 0
          %901 = vperm.xlu0 %900, %v899
          %v902 = vpop.permute.xlu0 %901
          %v904 = vadd.f32 %v902, 0.0
          %905 = vst [vmem:[%s239] sm:$0xff] %v904
        $region56: #{tpu_custom_call.1} parent=27 // pred_fallthru
          _
        %s906 = sand.u32 %s114, 1
        %s907 = scalar_lea.sflag [#allocation10], %s906
        %s908 = sand.u32 %s114, 1
        %s909 = smul.addr %s908, 8
        %s910 = scalar_lea.vmem [#allocation13], %s909
        // Predicated region
        $region57: #{tpu_custom_call.1} parent=27 // pred_check
          %p911 = pneg %p124
        $region58: #{tpu_custom_call.1} parent=27 // pred_check_branch
          %913 = sbr.rel (%p911) target = $region60
        $region59: #{tpu_custom_call.1} parent=27 // pred_region
          %915 = vsyncadd %s907, 0
          %s916 = smul.addr %s36, 8
          %s917 = scalar_lea.hbm %s3, %s916
          %s919 = sshll.u32 %s910, 4
          %s920 = int_to_ptr.vmem [resolvable:$true] %s919
          %s921 = sshll.u32 %s917, 4
          %s922 = int_to_ptr.hbm [resolvable:$true] %s921
          %924 = dma.vmem_to_hbm [thread:$0]  %s920, 128, %s922, %s907
        $region60: #{tpu_custom_call.1} parent=27 // pred_fallthru
          _
      $region28: #{tpu_custom_call.1} parent=5 // pred_fallthru
        _
      %p925 = scmp.le.s32.totalorder 2, %s26
      // Predicated region
      $region61: #{tpu_custom_call.1} parent=5 // pred_check
        %p926 = pneg %p925
      $region62: #{tpu_custom_call.1} parent=5 // pred_check_branch
        %928 = sbr.rel (%p926) target = $region64
      $region63: #{tpu_custom_call.1} parent=5 // pred_region
        %s929 = ssub.s32 %s26, 2
        // Predicated region
        $region65: #{tpu_custom_call.1} parent=63 // pred_check
          %p930 = pneg %p130
        $region66: #{tpu_custom_call.1} parent=63 // pred_check_branch
          %932 = sbr.rel (%p930) target = $region68
        $region67: #{tpu_custom_call.1} parent=63 // pred_region
          %s933 = sand.u32 %s115, 1
          %s934 = scalar_lea.sflag [#allocation10], %s933
          %s935 = sand.u32 %s115, 1
          %s936 = smul.addr %s935, 8
          %s937 = scalar_lea.vmem [#allocation13], %s936
          %939 = dma.done %s934, 128
        $region68: #{tpu_custom_call.1} parent=63 // pred_fallthru
          _
      $region64: #{tpu_custom_call.1} parent=5 // pred_fallthru
        _
    $region6: #{tpu_custom_call.1} parent=1 // loop_footer
      %s30 = sadd.s32 1, %s26
    $region7: #{tpu_custom_call.1} parent=1 // loop_footer_branch
      %25 = sbr.rel target = $region3
    $region8: #{tpu_custom_call.1} parent=1 // loop_exit
      _
    %940 = vsyncpa [#allocation9], 1
    %s941 = scalar_lea.sflag [#allocation9], 1
    %942 = vsyncpa %s941, 1
    %943 = vsyncpa [#allocation12], 1
    %s944 = scalar_lea.sflag [#allocation12], 1
    %945 = vsyncpa %s944, 1
    %946 = vsyncpa [#allocation10], 1
    %s947 = scalar_lea.sflag [#allocation10], 1
    %948 = vsyncpa %s947, 1

</llo_original>
